<compile_context>
chip_gen: v7x
topology: tpu7x:2x2x1
jax: 0.10.0
libtpu: 0.0.40
codegen_flags: <defaults>
</compile_context>

<pallas_src>
import functools

import jax
import jax.numpy as jnp
from jax.experimental import pallas as pl
from jax.experimental.pallas import tpu as pltpu


def _bce_partial_kernel(p_ref, t_ref, o_ref, *, tile_r, width, valid_elems,
                        blocks_per_split, full_blocks, has_tail):
    """Fused BCE over one (tile_r, width) block, accumulated into (1, 8, width)."""
    s = pl.program_id(0)
    i = pl.program_id(1)

    @pl.when(i == 0)
    def _():
        o_ref[...] = jnp.zeros_like(o_ref)

    p = p_ref[...].astype(jnp.float32)  # no-op for f32, upcast for bf16 inputs
    t = t_ref[...].astype(jnp.float32)

    # torch.nn.BCELoss (with its -100 clamp on each log term):
    #   elem = -(t*log(p) + (1-t)*log(1-p))
    # fused as -(log1mp + t*(logp - log1mp)); the positive form is accumulated
    # here and the single negate is applied to the final scalar in the wrapper.
    log_p = jnp.maximum(jnp.log(p), -100.0)
    log_1mp = jnp.maximum(jnp.log(1.0 - p), -100.0)
    pos = log_1mp + t * (log_p - log_1mp)

    def accumulate(vals):
        # Reduce only along the sublane-group axis: (tile_r, W) -> (tile_r//8, 8, W)
        # summed over axis 0 is pure element-wise vreg adds (VPU). The expensive
        # cross-lane reduction happens once, wrapper-side, on (n_split, 8, W).
        o_ref[...] += jnp.sum(vals.reshape(-1, 8, width), axis=0)[None]

    if not has_tail:
        # Every logical block is fully valid: unmasked fast path only.
        accumulate(pos)
    else:
        # NOTE: mask uses the UNCLAMPED logical block index while the input
        # index_map clamps the read to the last real block -- that asymmetry is
        # what zeroes duplicated padding blocks of an uneven split.
        block = s * blocks_per_split + i

        @pl.when(block < full_blocks)
        def _():
            accumulate(pos)

        @pl.when(block >= full_blocks)
        def _():
            # Flat element index (int32: assumes N*C < 2**31 elements).
            row = block * tile_r + jax.lax.broadcasted_iota(
                jnp.int32, (tile_r, width), 0)
            lane = jax.lax.broadcasted_iota(jnp.int32, (tile_r, width), 1)
            elem = row * width + lane
            # Also squashes NaN/Inf from garbage in padded regions.
            accumulate(jnp.where(elem < valid_elems, pos, 0.0))


def _default_num_splits():
    # v7x has 2 TensorCores per chip; v5e/v6e have 1 (where a size-2 split axis
    # would just be a serial loop). Heuristic only -- both settings are correct.
    try:
        kind = jax.devices()[0].device_kind.lower()
    except Exception:
        return 1
    return 2 if ("v7" in kind or "tpu7" in kind) else 1


def cross_entropy_loss(preds, targets, *, block_bytes=4 << 20, num_splits=None,
                       vmem_limit_bytes=48 << 20):
    """sum(BCE(preds, targets)) / N for (N, C) probability inputs."""
    assert preds.shape == targets.shape and preds.ndim == 2
    n, c = preds.shape
    valid_elems = n * c

    if num_splits is None:
        num_splits = _default_num_splits()

    # Lane-dense slab: keep (N, C) directly when C is a lane multiple (free),
    # otherwise flatten + pad to a (rows, W) slab with W a multiple of 128 so
    # every vreg lane carries real data.
    if c % 128 == 0:
        p_slab, t_slab = preds, targets
        rows, width = n, c
    else:
        width = 128 if valid_elems < 8 * 512 else 512
        padded = ((valid_elems + 8 * width - 1) // (8 * width)) * (8 * width)
        pad = padded - valid_elems
        p_slab = jnp.pad(preds.reshape(-1), (0, pad),
                         constant_values=0.5).reshape(-1, width)
        t_slab = jnp.pad(targets.reshape(-1), (0, pad),
                         constant_values=0.5).reshape(-1, width)
        rows = padded // width

    itemsize = jnp.dtype(p_slab.dtype).itemsize
    # ~block_bytes per input block, rows a multiple of 8, never larger than the
    # (rounded-up) slab. 2 inputs x 2 pipeline buffers x block stays under the
    # vmem_limit_bytes budget on every generation.
    rows_per_block = max(8, (block_bytes // max(1, width * itemsize)) // 8 * 8)
    rows_rounded = ((rows + 7) // 8) * 8
    tile_r = min(rows_per_block, rows_rounded)

    total_blocks = pl.cdiv(rows, tile_r)
    n_split = max(1, min(num_splits, total_blocks))
    bps = pl.cdiv(total_blocks, n_split)            # blocks per split
    block_elems = tile_r * width
    full_blocks = valid_elems // block_elems        # blocks that are 100% valid
    has_tail = full_blocks < n_split * bps

    def in_map(s, i):
        # Clamp so trailing padding blocks of an uneven split re-read the last
        # real block; their contribution is masked to zero in the kernel.
        return (jnp.minimum(s * bps + i, total_blocks - 1), 0)

    kernel = functools.partial(
        _bce_partial_kernel,
        tile_r=tile_r, width=width, valid_elems=valid_elems,
        blocks_per_split=bps, full_blocks=full_blocks, has_tail=has_tail)

    partials = pl.pallas_call(
        kernel,
        out_shape=jax.ShapeDtypeStruct((n_split, 8, width), jnp.float32),
        grid=(n_split, bps),
        in_specs=[
            pl.BlockSpec((tile_r, width), in_map),
            pl.BlockSpec((tile_r, width), in_map),
        ],
        # Output block depends only on the split axis -> resident VMEM
        # accumulator across the inner (reduction) axis.
        out_specs=pl.BlockSpec((1, 8, width), lambda s, i: (s, 0, 0)),
        # TODO(synk): on v7x, verify the split axis shards across both
        # TensorCores; if not, switch to pltpu.CORE_PARALLEL / pl.core_map.
        compiler_params=pltpu.CompilerParams(
            dimension_semantics=("parallel", "arbitrary"),
            vmem_limit_bytes=vmem_limit_bytes),
    )(p_slab, t_slab)

    # Single negate (fused-loss sign) + tiny cross-lane reduction + divide by N.
    return -jnp.sum(partials) / jnp.float32(n)


def _reference(preds, targets):
    n = preds.shape[0]
    log_p = jnp.maximum(jnp.log(preds), -100.0)
    log_1mp = jnp.maximum(jnp.log(1.0 - preds), -100.0)
    return -jnp.sum(targets * log_p + (1.0 - targets) * log_1mp) / n


if __name__ == "__main__":
    key = jax.random.PRNGKey(0)
    k1, k2, k3, k4, k5, k6 = jax.random.split(key, 6)

    # Small (N, C) shapes consistent with the module's interface.
    N, C = 16, 128
    preds = jax.nn.sigmoid(jax.random.normal(k1, (N, C), dtype=jnp.float32))
    targets = jax.random.uniform(k2, (N, C), dtype=jnp.float32)
    loss = jax.block_until_ready(cross_entropy_loss(preds, targets))
    ref = _reference(preds, targets)
    assert jnp.allclose(loss, ref, rtol=1e-5, atol=1e-5), (loss, ref)

    # Multi-block + uneven-split + masked-tail path (forced small tiles).
    N2, C2 = 300, 128
    preds2 = jax.nn.sigmoid(jax.random.normal(k3, (N2, C2), dtype=jnp.float32))
    targets2 = jax.random.uniform(k4, (N2, C2), dtype=jnp.float32)
    loss2 = jax.block_until_ready(cross_entropy_loss(
        preds2, targets2, block_bytes=32 * C2 * 4, num_splits=2))
    ref2 = _reference(preds2, targets2)
    assert jnp.allclose(loss2, ref2, rtol=1e-5, atol=1e-5), (loss2, ref2)

    # Non-128-multiple C exercises the lane-dense flatten + element-count mask.
    N3, C3 = 333, 20
    preds3 = jax.nn.sigmoid(jax.random.normal(k5, (N3, C3), dtype=jnp.float32))
    targets3 = jax.random.uniform(k6, (N3, C3), dtype=jnp.float32)
    loss3 = jax.block_until_ready(cross_entropy_loss(
        preds3, targets3, block_bytes=8 * 512 * 4, num_splits=2))
    ref3 = _reference(preds3, targets3)
    assert jnp.allclose(loss3, ref3, rtol=1e-5, atol=1e-5), (loss3, ref3)

    print("KERNEL_OK")
</pallas_src>

<mosaic_0001>
module attributes {stable_mosaic.version = 11 : i64} {
  func.func @_bce_partial_kernel(%arg0: i32, %arg1: i32, %arg2: memref<16x128xf32, #tpu.memory_space<vmem>>, %arg3: memref<16x128xf32, #tpu.memory_space<vmem>>, %arg4: memref<1x8x128xf32, #tpu.memory_space<vmem>>) attributes {dimension_semantics = [#tpu.dimension_semantics<parallel>, #tpu.dimension_semantics<arbitrary>], iteration_bounds = array<i64: 1, 1>, scalar_prefetch = 0 : i64, scratch_operands = 0 : i64, tpu.core_type = #tpu.core_type<tc>, window_params = [{transform_indices = @transform_0, window_bounds = array<i64: 16, 128>}, {transform_indices = @transform_1, window_bounds = array<i64: 16, 128>}, {transform_indices = @transform_2, window_bounds = array<i64: 1, 8, 128>}]} {
    %c0_i32 = arith.constant 0 : i32
    %0 = arith.cmpi eq, %arg1, %c0_i32 : i32
    %1 = arith.extui %0 : i1 to i32
    %c0_i32_0 = arith.constant 0 : i32
    %2 = arith.cmpi ne, %1, %c0_i32_0 : i32
    scf.if %2 {
      %cst_13 = arith.constant 0.000000e+00 : f32
      %22 = vector.broadcast %cst_13 : f32 to vector<1x8x128xf32>
      %c0_14 = arith.constant 0 : index
      %c0_15 = arith.constant 0 : index
      %c0_16 = arith.constant 0 : index
      %23 = vector.load %arg4[%c0_14, %c0_15, %c0_16] : memref<1x8x128xf32, #tpu.memory_space<vmem>>, vector<1x8x128xf32>
      tpu.vector_store %arg4[%c0_14, %c0_15, %c0_16], %22 {strides = array<i32>} : memref<1x8x128xf32, #tpu.memory_space<vmem>>, vector<1x8x128xf32>,
    } else {
    }
    %c0 = arith.constant 0 : index
    %c0_1 = arith.constant 0 : index
    %3 = vector.load %arg2[%c0, %c0_1] : memref<16x128xf32, #tpu.memory_space<vmem>>, vector<16x128xf32>
    %c0_2 = arith.constant 0 : index
    %c0_3 = arith.constant 0 : index
    %4 = vector.load %arg3[%c0_2, %c0_3] : memref<16x128xf32, #tpu.memory_space<vmem>>, vector<16x128xf32>
    %5 = math.log %3 : vector<16x128xf32>
    %cst = arith.constant -1.000000e+02 : f32
    %6 = vector.broadcast %cst : f32 to vector<16x128xf32>
    %7 = arith.maximumf %5, %6 : vector<16x128xf32>
    %cst_4 = arith.constant 1.000000e+00 : f32
    %8 = vector.broadcast %cst_4 : f32 to vector<16x128xf32>
    %9 = arith.subf %8, %3 : vector<16x128xf32>
    %10 = math.log %9 : vector<16x128xf32>
    %cst_5 = arith.constant -1.000000e+02 : f32
    %11 = vector.broadcast %cst_5 : f32 to vector<16x128xf32>
    %12 = arith.maximumf %10, %11 : vector<16x128xf32>
    %13 = arith.subf %7, %12 : vector<16x128xf32>
    %14 = arith.mulf %4, %13 : vector<16x128xf32>
    %15 = arith.addf %12, %14 : vector<16x128xf32>
    %c0_6 = arith.constant 0 : index
    %c0_7 = arith.constant 0 : index
    %c0_8 = arith.constant 0 : index
    %16 = vector.load %arg4[%c0_6, %c0_7, %c0_8] : memref<1x8x128xf32, #tpu.memory_space<vmem>>, vector<1x8x128xf32>
    %17 = vector.shape_cast %15 : vector<16x128xf32> to vector<2x8x128xf32>
    %cst_9 = arith.constant dense<0.000000e+00> : vector<8x128xf32>
    %18 = vector.multi_reduction <add>, %17, %cst_9 [0] : vector<2x8x128xf32> to vector<8x128xf32>
    %19 = vector.shape_cast %18 : vector<8x128xf32> to vector<1x8x128xf32>
    %20 = arith.addf %16, %19 : vector<1x8x128xf32>
    %c0_10 = arith.constant 0 : index
    %c0_11 = arith.constant 0 : index
    %c0_12 = arith.constant 0 : index
    %21 = vector.load %arg4[%c0_10, %c0_11, %c0_12] : memref<1x8x128xf32, #tpu.memory_space<vmem>>, vector<1x8x128xf32>
    tpu.vector_store %arg4[%c0_10, %c0_11, %c0_12], %20 {strides = array<i32>} : memref<1x8x128xf32, #tpu.memory_space<vmem>>, vector<1x8x128xf32>,
    return
  }
  func.func @transform_0(%arg0: i32, %arg1: i32) -> (i32, i32) {
    %c1_i32 = arith.constant 1 : i32
    %0 = arith.muli %arg0, %c1_i32 : i32
    %1 = arith.addi %0, %arg1 : i32
    %c0_i32 = arith.constant 0 : i32
    %2 = arith.minsi %1, %c0_i32 : i32
    %c0_i32_0 = arith.constant 0 : i32
    %c0_i32_1 = arith.constant 0 : i32
    return %2, %c0_i32_0 : i32, i32
  }
  func.func @transform_1(%arg0: i32, %arg1: i32) -> (i32, i32) {
    %c1_i32 = arith.constant 1 : i32
    %0 = arith.muli %arg0, %c1_i32 : i32
    %1 = arith.addi %0, %arg1 : i32
    %c0_i32 = arith.constant 0 : i32
    %2 = arith.minsi %1, %c0_i32 : i32
    %c0_i32_0 = arith.constant 0 : i32
    %c0_i32_1 = arith.constant 0 : i32
    return %2, %c0_i32_0 : i32, i32
  }
  func.func @transform_2(%arg0: i32, %arg1: i32) -> (i32, i32, i32) {
    %c0_i32 = arith.constant 0 : i32
    %c0_i32_0 = arith.constant 0 : i32
    %c0_i32_1 = arith.constant 0 : i32
    return %arg0, %c0_i32, %c0_i32_0 : i32, i32, i32
  }
}

</mosaic_0001>

<llo_original>
// kernel: tpu_custom_call.1
$region0: #{tpu_custom_call.1}
  #allocation0 [shape = 'u32[]', space=smem, size = 0x4, offset = 0x4, fixed_abs, tag = 'smem constant byte address 0x4 - core index']
  #allocation1 [shape = 'u32[144,128]{1,0:T(1,128)}', space=vmem, size = 0x12000, scoped, tag = 'internal scratch']
  %s0 = inlined_call_operand.hbm [shape: f32[16,128], index: 0, kind: input, shape index: {}]
  %s1 = inlined_call_operand.hbm [shape: f32[16,128], index: 1, kind: input, shape index: {}]
  %s2 = inlined_call_operand.hbm [shape: f32[1,8,128], index: 2, kind: output, shape index: {}]
  %s3 = sld [smem:[#allocation0]]
  $region30: #{tpu_custom_call.1} parent=0
    _
  %s5 = ssub.s32 1, %s3
  %s6 = scalar_select 0, %s5, %s3
  $region1: #{tpu_custom_call.1} parent=0
    #allocation2 [shape = 'u8[8192]{0}', space=vmem, size = 0x2000, scoped, tag = 'input window, operand 0, single buffered']
    #allocation3 [shape = 's32[1]{0}', space=sflag, size = 0x4, scoped, tag = 'scoped memory for tpu_custom_call.1']
    #allocation4 [shape = 's32[1]{0}', space=sflag, size = 0x4, scoped, tag = 'scoped memory for tpu_custom_call.1']
    #allocation5 [shape = 'u8[8192]{0}', space=vmem, size = 0x2000, scoped, tag = 'input window, operand 1, single buffered']
    #allocation6 [shape = 's32[1]{0}', space=sflag, size = 0x4, scoped, tag = 'scoped memory for tpu_custom_call.1']
    #allocation7 [shape = 'u8[4096]{0}', space=vmem, size = 0x1000, scoped, tag = 'output window, operand 0, single buffered']
    %7 = vsyncpa [#allocation3], 0
    %8 = vsyncpa [#allocation6], 0
    %9 = vsyncpa [#allocation4], 0
    // Predicated region
    $region2: #{tpu_custom_call.1} parent=1 // pred_check
      _
    $region3: #{tpu_custom_call.1} parent=1 // pred_check_branch
      %11 = sbr.rel (0) target = $region5
    $region4: #{tpu_custom_call.1} parent=1 // pred_region
      %s12 = sadd.s32 0, 0
      %p13 = scmp.lt.s32.totalorder %s12, 0
      %s14 = scalar_select %p13, %s12, 0
      %s15 = smul.u32 2, %s14
      %s17 = ssub.s32 256, 256
      %18 = vsyncadd [#allocation3], %s17
      %s19 = smul.addr %s15, 128
      %s20 = scalar_lea.hbm %s0, %s19
      %s21 = sshll.u32 [#allocation2], 4
      %s22 = int_to_ptr.vmem [resolvable:$true] %s21
      %27 = dma.hbm_to_vmem [thread:$0]  %s20, 256, %s22, [#allocation3], 128, 128, 8
    $region5: #{tpu_custom_call.1} parent=1 // pred_fallthru
      _
    // Predicated region
    $region6: #{tpu_custom_call.1} parent=1 // pred_check
      _
    $region7: #{tpu_custom_call.1} parent=1 // pred_check_branch
      %29 = sbr.rel (0) target = $region9
    $region8: #{tpu_custom_call.1} parent=1 // pred_region
      %s30 = sadd.s32 0, 0
      %p31 = scmp.lt.s32.totalorder %s30, 0
      %s32 = scalar_select %p31, %s30, 0
      %s33 = smul.u32 2, %s32
      %s35 = ssub.s32 256, 256
      %36 = vsyncadd [#allocation6], %s35
      %s37 = smul.addr %s33, 128
      %s38 = scalar_lea.hbm %s1, %s37
      %s39 = sshll.u32 [#allocation5], 4
      %s40 = int_to_ptr.vmem [resolvable:$true] %s39
      %45 = dma.hbm_to_vmem [thread:$0]  %s38, 256, %s40, [#allocation6], 128, 128, 8
    $region9: #{tpu_custom_call.1} parent=1 // pred_fallthru
      _
    // Predicated region
    $region10: #{tpu_custom_call.1} parent=1 // pred_check
      _
    $region11: #{tpu_custom_call.1} parent=1 // pred_check_branch
      %47 = sbr.rel (0) target = $region13
    $region12: #{tpu_custom_call.1} parent=1 // pred_region
      %48 = dma.done [#allocation3], 256
    $region13: #{tpu_custom_call.1} parent=1 // pred_fallthru
      _
    // Predicated region
    $region14: #{tpu_custom_call.1} parent=1 // pred_check
      _
    $region15: #{tpu_custom_call.1} parent=1 // pred_check_branch
      %50 = sbr.rel (0) target = $region17
    $region16: #{tpu_custom_call.1} parent=1 // pred_region
      %51 = dma.done [#allocation6], 256
    $region17: #{tpu_custom_call.1} parent=1 // pred_fallthru
      _
    %s52 = sadd.s32 0, 0
    %p53 = scmp.lt.s32.totalorder %s52, 0
    %s54 = scalar_select %p53, %s52, 0
    %s55 = smul.u32 2, %s54
    %s56 = sadd.s32 0, 0
    %p57 = scmp.lt.s32.totalorder %s56, 0
    %s58 = scalar_select %p57, %s56, 0
    %s59 = smul.u32 2, %s58
    %p60 = scmp.eq.s32.totalorder 0, 0
    // Predicated region
    $region18: #{tpu_custom_call.1} parent=1 // pred_check
      %p61 = pneg %p60
    $region19: #{tpu_custom_call.1} parent=1 // pred_check_branch
      %63 = sbr.rel (%p61) target = $region21
    $region20: #{tpu_custom_call.1} parent=1 // pred_region
      %64 = vst [vmem:[#allocation7] sm:$0xff] 0.0
    $region21: #{tpu_custom_call.1} parent=1 // pred_fallthru
      _
    %v65 = vld [vmem:[#allocation2] sm:$0xff]
    %v66 = vld [vmem:[#allocation2 + $0x8] sm:$0xff]
    %v67 = vld [vmem:[#allocation5] sm:$0xff]
    %v68 = vld [vmem:[#allocation5 + $0x8] sm:$0xff]
    %v69 = vlog2.pop %v65
    %v70 = vmul.f32 %v69, 0.6931472
    %v71 = vlog2.pop %v66
    %v72 = vmul.f32 %v71, 0.6931472
    %v73 = vmax.f32 %v70, -100.0
    %v74 = vmax.f32 %v72, -100.0
    %v75 = vsub.f32 1.0, %v65
    %v76 = vsub.f32 1.0, %v66
    %v77 = vlog2.pop %v75
    %v78 = vmul.f32 %v77, 0.6931472
    %v79 = vlog2.pop %v76
    %v80 = vmul.f32 %v79, 0.6931472
    %v81 = vmax.f32 %v78, -100.0
    %v82 = vmax.f32 %v80, -100.0
    %v83 = vsub.f32 %v73, %v81
    %v84 = vsub.f32 %v74, %v82
    %v85 = vmul.f32 %v67, %v83
    %v86 = vmul.f32 %v68, %v84
    %v87 = vadd.f32 %v81, %v85
    %v88 = vadd.f32 %v82, %v86
    %v89 = vld [vmem:[#allocation7] sm:$0xff]
    %v90 = vadd.f32 %v87, %v88
    %v91 = vadd.f32 %v89, %v90
    %92 = vst [vmem:[#allocation7] sm:$0xff] %v91
    // Predicated region
    $region22: #{tpu_custom_call.1} parent=1 // pred_check
      _
    $region23: #{tpu_custom_call.1} parent=1 // pred_check_branch
      %94 = sbr.rel (0) target = $region25
    $region24: #{tpu_custom_call.1} parent=1 // pred_region
      %s96 = ssub.s32 128, 128
      %97 = vsyncadd [#allocation4], %s96
      %s99 = sshll.u32 [#allocation7], 4
      %s100 = int_to_ptr.vmem [resolvable:$true] %s99
      %102 = dma.vmem_to_hbm [thread:$0]  %s100, 128, %s2, [#allocation4]
    $region25: #{tpu_custom_call.1} parent=1 // pred_fallthru
      _
    // Predicated region
    $region26: #{tpu_custom_call.1} parent=1 // pred_check
      _
    $region27: #{tpu_custom_call.1} parent=1 // pred_check_branch
      %104 = sbr.rel (0) target = $region29
    $region28: #{tpu_custom_call.1} parent=1 // pred_region
      %105 = dma.done [#allocation4], 128
    $region29: #{tpu_custom_call.1} parent=1 // pred_fallthru
      _
    %106 = vsyncpa [#allocation3], 1
    %107 = vsyncpa [#allocation6], 1
    %108 = vsyncpa [#allocation4], 1

</llo_original>
